<compile_context>
chip_gen: v5e
topology: v5e:2x2
jax: 0.10.0
libtpu: 0.0.40
codegen_flags: <defaults>
</compile_context>

<pallas_src>
import functools

import numpy as np
import jax
import jax.numpy as jnp
from jax.experimental import pallas as pl
from jax.experimental.pallas import tpu as pltpu


CONFIG = {
    "decoder": {
        "fc_layers": [
            {"in_features": 16, "out_features": 32, "activation": "ReLU"},
        ],
        "lstm_layers": [
            {"input_size": 32, "hidden_size": 32, "num_layers": 1, "batch_first": True},
        ],
        "deconv_layers": [
            {"in_channels": 32, "out_channels": 16, "kernel_size": 4,
             "stride": 2, "padding": 1, "activation": "ReLU"},
            {"in_channels": 16, "out_channels": "n_channels", "kernel_size": 4,
             "stride": 2, "padding": 1, "activation": "Tanh"},
        ],
    }
}


def _round_up(n, m):
    return ((n + m - 1) // m) * m


# ------------------------------ Fused kernel --------------------------------

def _fused_decoder_kernel(x_ref, wg_ref, b_ref, m_ref, o_ref, *,
                          B, T, H, F_in, C1T1, C2T2):
    """Whole decoder forward in one kernel invocation (single grid point).

    x_ref:  (T*B, F_in)          time-major flattening of the (B, T, F_in) input
    wg_ref: (2H + F_in, 4H) f32  rows [0:H)=w_ih^T, [H:2H)=w_hh^T,
                                 rows [2H:2H+F_in) lanes [0:H) = fc_w^T
    b_ref:  (8, L) f32           row0[0:H]=fc_b, row1[0:4H]=b_ih+b_hh,
                                 row2[0:C1T1]=b1, row3[0:C2T2]=b2
    m_ref:  (R, C1T1+C2T2) bf16  lanes [0:C1T1)=m1 (rows (t,h) time-major),
                                 lanes [C1T1:)=m2 (rows (c,t) channel-major)
    o_ref:  (B, C2T2) f32        channel-major flattened output
    """
    # ---- unpack packed operands with static ref slices ----------------------
    w_ih = wg_ref[0:H, :]                          # (H, 4H)
    w_hh = wg_ref[H:2 * H, :]                      # (H, 4H)
    fc_w = wg_ref[2 * H:2 * H + F_in, 0:H]         # (F_in, H)

    fc_b = b_ref[0:1, 0:H]
    b_g = b_ref[1:2, 0:4 * H]
    b1 = b_ref[2:3, 0:C1T1]
    b2 = b_ref[3:4, 0:C2T2]

    TH = T * H
    m1 = m_ref[0:TH, 0:C1T1]                       # (T*H, C1*T1) bf16
    m2 = m_ref[0:C1T1, C1T1:C1T1 + C2T2]           # (C1*T1, C2*T2) bf16

    # ---- FC: Linear + ReLU on all T*B rows at once (single MXU pass) --------
    h_fc = jnp.dot(x_ref[...], fc_w, preferred_element_type=jnp.float32)
    h_fc = jnp.maximum(h_fc + fc_b, 0.0)           # (T*B, H)

    # ---- LSTM input projection for every timestep in one matmul -------------
    xg = jnp.dot(h_fc, w_ih, preferred_element_type=jnp.float32) + b_g  # (T*B, 4H)

    # ---- LSTM recurrence, statically unrolled (T small & fixed) -------------
    h = jnp.zeros((B, H), jnp.float32)
    c = jnp.zeros((B, H), jnp.float32)
    hs = []
    for t in range(T):
        # time-major layout -> one contiguous static slice per step
        xg_t = xg[t * B:(t + 1) * B, :]                            # (B, 4H)
        gates = xg_t + jnp.dot(h, w_hh, preferred_element_type=jnp.float32)
        # PyTorch gate order: i, f, g, o
        i_g = jax.nn.sigmoid(gates[:, 0:H])
        f_g = jax.nn.sigmoid(gates[:, H:2 * H])
        g_g = jnp.tanh(gates[:, 2 * H:3 * H])
        o_g = jax.nn.sigmoid(gates[:, 3 * H:4 * H])
        c = f_g * c + i_g * g_g
        h = o_g * jnp.tanh(c)
        hs.append(h)

    # Lane-dense time-major flattening: y[b, t*H + h_idx] = h_t[b, h_idx]
    y = jnp.concatenate(hs, axis=-1)                               # (B, T*H)

    # ---- Deconv stack as bf16 Toeplitz matmuls, f32 accumulation ------------
    y1 = jnp.dot(y.astype(m1.dtype), m1, preferred_element_type=jnp.float32)
    y1 = jnp.maximum(y1 + b1, 0.0)                                 # (B, C1*T1)
    y2 = jnp.dot(y1.astype(m2.dtype), m2, preferred_element_type=jnp.float32)
    o_ref[...] = jnp.tanh(y2 + b2).astype(o_ref.dtype)             # (B, C2*T2)


# ----------------------------- Parameter setup -------------------------------

def build_deconv_matrix(w, t_in, stride, pad, row_order="channel_major"):
    """Dense scatter matrix for ConvTranspose1d with weight (Ci, Co, K).

    row_order="channel_major": rows indexed (ci, ti)  -> matches NCW flattening.
    row_order="time_major":    rows indexed (ti, ci)  -> matches time-major
                               lane concatenation of the LSTM hidden states.
    Columns are always (co, to) channel-major.
    """
    c_in, c_out, k = w.shape
    t_out = (t_in - 1) * stride - 2 * pad + k
    m = np.zeros((c_in, t_in, c_out, t_out), dtype=np.float32)
    for ti in range(t_in):
        for kk in range(k):
            to = ti * stride - pad + kk
            if 0 <= to < t_out:
                m[:, ti, :, to] += w[:, :, kk]
    if row_order == "time_major":
        m = m.transpose(1, 0, 2, 3)
    return m.reshape(c_in * t_in, c_out * t_out), t_out


def init_params(key, cfg, n_channels, hidden_size, seq_len):
    dec = cfg["decoder"]
    keys = jax.random.split(key, 10)
    s = 0.2

    fc = dec["fc_layers"][0]
    F_in = fc["in_features"]
    fc_w = jax.random.normal(keys[0], (fc["out_features"], F_in), jnp.float32) * s
    fc_b = jax.random.normal(keys[1], (fc["out_features"],), jnp.float32) * 0.1

    lc = dec["lstm_layers"][0]
    H = lc["hidden_size"]
    assert H == hidden_size and lc["input_size"] == fc["out_features"]
    w_ih = jax.random.normal(keys[2], (4 * H, lc["input_size"]), jnp.float32) * s
    w_hh = jax.random.normal(keys[3], (4 * H, H), jnp.float32) * s
    b_ih = jax.random.normal(keys[4], (4 * H,), jnp.float32) * 0.1
    b_hh = jax.random.normal(keys[5], (4 * H,), jnp.float32) * 0.1

    d1, d2 = dec["deconv_layers"]
    c1 = d1["out_channels"]
    c2 = n_channels  # out_channels == 'n_channels'
    dw1 = jax.random.normal(keys[6], (d1["in_channels"], c1, d1["kernel_size"]), jnp.float32) * s
    db1 = jax.random.normal(keys[7], (c1,), jnp.float32) * 0.1
    dw2 = jax.random.normal(keys[8], (c1, c2, d2["kernel_size"]), jnp.float32) * s
    db2 = jax.random.normal(keys[9], (c2,), jnp.float32) * 0.1

    T = seq_len
    # Layer-1 matrix in time-major row order: directly consumes the LSTM's
    # time-major lane concatenation (no permute(0,2,1) anywhere).
    m1, t1 = build_deconv_matrix(np.asarray(dw1), T, d1["stride"], d1["padding"],
                                 row_order="time_major")
    # Layer-2 matrix in channel-major row order: matches layer-1's (co, to) output.
    m2, t2 = build_deconv_matrix(np.asarray(dw2), t1, d2["stride"], d2["padding"],
                                 row_order="channel_major")
    C1T1, C2T2 = c1 * t1, c2 * t2

    # ---- operand packing: 10 arrays -> 3 (fewer per-operand DMAs) -----------
    wg_rows = _round_up(2 * H + F_in, 8)
    wg_pack = np.zeros((wg_rows, 4 * H), np.float32)
    wg_pack[0:H, :] = np.asarray(w_ih).T
    wg_pack[H:2 * H, :] = np.asarray(w_hh).T
    wg_pack[2 * H:2 * H + F_in, 0:H] = np.asarray(fc_w).T

    b_lanes = _round_up(max(H, 4 * H, C1T1, C2T2), 128)
    b_pack = np.zeros((8, b_lanes), np.float32)
    b_pack[0, 0:H] = np.asarray(fc_b)
    b_pack[1, 0:4 * H] = np.asarray(b_ih) + np.asarray(b_hh)
    b_pack[2, 0:C1T1] = np.repeat(np.asarray(db1), t1)
    b_pack[3, 0:C2T2] = np.repeat(np.asarray(db2), t2)

    m_rows = _round_up(max(T * H, C1T1), 8)
    m_pack = np.zeros((m_rows, C1T1 + C2T2), np.float32)
    m_pack[0:T * H, 0:C1T1] = m1
    m_pack[0:C1T1, C1T1:C1T1 + C2T2] = m2

    return {
        "hidden_size": H, "f_in": F_in,
        "wg_pack": jnp.asarray(wg_pack),
        "b_pack": jnp.asarray(b_pack),
        # bf16 Toeplitz block: halves the dominant HBM->VMEM bytes, single-pass
        # bf16 MXU matmuls with f32 accumulation.
        "m_pack": jnp.asarray(m_pack, jnp.bfloat16),
        "c1": c1, "t1": t1, "c2": c2, "t2": t2,
        "C1T1": C1T1, "C2T2": C2T2,
        # raw copies kept for the numpy reference check
        "raw": {"fc_w": np.asarray(fc_w), "fc_b": np.asarray(fc_b),
                "w_ih": np.asarray(w_ih), "w_hh": np.asarray(w_hh),
                "b_ih": np.asarray(b_ih), "b_hh": np.asarray(b_hh),
                "dw1": np.asarray(dw1), "db1": np.asarray(db1),
                "dw2": np.asarray(dw2), "db2": np.asarray(db2),
                "stride1": d1["stride"], "pad1": d1["padding"],
                "stride2": d2["stride"], "pad2": d2["padding"]},
    }


# ------------------------------ Model forward --------------------------------

def decoder_forward(x, params):
    """x: (B, T, F_in) float32 (batch_first). Returns (B, n_channels, T_out)."""
    B, T, F_in = x.shape
    H = params["hidden_size"]
    c2, t2 = params["c2"], params["t2"]
    C1T1, C2T2 = params["C1T1"], params["C2T2"]

    # Time-major flattening (2 KiB host-side transpose): row index = t*B + b,
    # so the kernel's serial recurrence reads one contiguous slice per step.
    x2d = jnp.transpose(x, (1, 0, 2)).reshape(T * B, F_in)

    out_flat = pl.pallas_call(
        functools.partial(_fused_decoder_kernel, B=B, T=T, H=H, F_in=F_in,
                          C1T1=C1T1, C2T2=C2T2),
        out_shape=jax.ShapeDtypeStruct((B, C2T2), jnp.float32),
        in_specs=[pl.BlockSpec(memory_space=pltpu.MemorySpace.VMEM)] * 4,
        out_specs=pl.BlockSpec(memory_space=pltpu.MemorySpace.VMEM),
    )(x2d, params["wg_pack"], params["b_pack"], params["m_pack"])

    return out_flat.reshape(B, c2, t2)


# ------------------------------ Numpy reference ------------------------------

def _sigmoid(v):
    return 1.0 / (1.0 + np.exp(-v))


def reference_forward(x, p):
    r = p["raw"]
    x = np.asarray(x, np.float64)
    B, T, _ = x.shape
    H = p["hidden_size"]

    h = np.maximum(x @ r["fc_w"].T + r["fc_b"], 0.0)

    hs = np.zeros((B, H)); cs = np.zeros((B, H)); outs = []
    for t in range(T):
        g = h[:, t, :] @ r["w_ih"].T + hs @ r["w_hh"].T + r["b_ih"] + r["b_hh"]
        i = _sigmoid(g[:, :H]); f = _sigmoid(g[:, H:2 * H])
        gg = np.tanh(g[:, 2 * H:3 * H]); o = _sigmoid(g[:, 3 * H:])
        cs = f * cs + i * gg
        hs = o * np.tanh(cs)
        outs.append(hs)
    seq = np.stack(outs, axis=1)          # (B, T, H)
    y = seq.transpose(0, 2, 1)            # (B, H, T)

    def deconv1d(xin, w, b, stride, pad):
        Bc, Ci, Ti = xin.shape
        _, Co, K = w.shape
        To = (Ti - 1) * stride - 2 * pad + K
        out = np.zeros((Bc, Co, To))
        for ti in range(Ti):
            for kk in range(K):
                to = ti * stride - pad + kk
                if 0 <= to < To:
                    out[:, :, to] += np.einsum("bi,io->bo", xin[:, :, ti], w[:, :, kk])
        return out + b[None, :, None]

    y = np.maximum(deconv1d(y, r["dw1"], r["db1"], r["stride1"], r["pad1"]), 0.0)
    y = np.tanh(deconv1d(y, r["dw2"], r["db2"], r["stride2"], r["pad2"]))
    return y


# ----------------------------------- Main -------------------------------------

if __name__ == "__main__":
    B, T, F_IN = 2, 8, 16
    N_CHANNELS, HIDDEN = 4, 32

    key = jax.random.PRNGKey(0)
    k_x, k_p = jax.random.split(key)
    x = jax.random.normal(k_x, (B, T, F_IN), jnp.float32)
    params = init_params(k_p, CONFIG, N_CHANNELS, HIDDEN, T)

    out = decoder_forward(x, params)
    out = jax.block_until_ready(out)

    ref = reference_forward(np.asarray(x), params)
    assert out.shape == (B, N_CHANNELS, 4 * T), out.shape
    np.testing.assert_allclose(np.asarray(out), ref, rtol=2e-2, atol=2e-2)
    print("KERNEL_OK")
</pallas_src>

<mosaic_0001>
module attributes {stable_mosaic.version = 11 : i64} {
  func.func @_fused_decoder_kernel(%arg0: memref<16x16xf32, #tpu.memory_space<vmem>>, %arg1: memref<80x128xf32, #tpu.memory_space<vmem>>, %arg2: memref<8x256xf32, #tpu.memory_space<vmem>>, %arg3: memref<256x384xbf16, #tpu.memory_space<vmem>>, %arg4: memref<2x128xf32, #tpu.memory_space<vmem>>) attributes {dimension_semantics = [], scalar_prefetch = 0 : i64, scratch_operands = 0 : i64, tpu.core_type = #tpu.core_type<tc>} {
    %c0 = arith.constant 0 : index
    %c0_0 = arith.constant 0 : index
    %0 = vector.load %arg1[%c0, %c0_0] : memref<80x128xf32, #tpu.memory_space<vmem>>, vector<32x128xf32>
    %c32 = arith.constant 32 : index
    %c0_1 = arith.constant 0 : index
    %1 = vector.load %arg1[%c32, %c0_1] : memref<80x128xf32, #tpu.memory_space<vmem>>, vector<32x128xf32>
    %c64 = arith.constant 64 : index
    %c0_2 = arith.constant 0 : index
    %2 = vector.load %arg1[%c64, %c0_2] : memref<80x128xf32, #tpu.memory_space<vmem>>, vector<16x32xf32>
    %c0_3 = arith.constant 0 : index
    %c0_4 = arith.constant 0 : index
    %3 = vector.load %arg2[%c0_3, %c0_4] : memref<8x256xf32, #tpu.memory_space<vmem>>, vector<1x32xf32>
    %c1 = arith.constant 1 : index
    %c0_5 = arith.constant 0 : index
    %4 = vector.load %arg2[%c1, %c0_5] : memref<8x256xf32, #tpu.memory_space<vmem>>, vector<1x128xf32>
    %c2 = arith.constant 2 : index
    %c0_6 = arith.constant 0 : index
    %5 = vector.load %arg2[%c2, %c0_6] : memref<8x256xf32, #tpu.memory_space<vmem>>, vector<1x256xf32>
    %c3 = arith.constant 3 : index
    %c0_7 = arith.constant 0 : index
    %6 = vector.load %arg2[%c3, %c0_7] : memref<8x256xf32, #tpu.memory_space<vmem>>, vector<1x128xf32>
    %c0_8 = arith.constant 0 : index
    %c0_9 = arith.constant 0 : index
    %7 = vector.load %arg3[%c0_8, %c0_9] : memref<256x384xbf16, #tpu.memory_space<vmem>>, vector<256x256xbf16>
    %c0_10 = arith.constant 0 : index
    %c256 = arith.constant 256 : index
    %8 = vector.load %arg3[%c0_10, %c256] : memref<256x384xbf16, #tpu.memory_space<vmem>>, vector<256x128xbf16>
    %c0_11 = arith.constant 0 : index
    %c0_12 = arith.constant 0 : index
    %9 = vector.load %arg0[%c0_11, %c0_12] : memref<16x16xf32, #tpu.memory_space<vmem>>, vector<16x16xf32>
    %cst = arith.constant dense<0.000000e+00> : vector<16x32xf32>
    %10 = tpu.matmul %9, %2, %cst {dimension_numbers = #tpu.dot_dimension_numbers<[1], [0], [0], [1], [0, 0, 1, 1], [], []>} : vector<16x16xf32>, vector<16x32xf32>, vector<16x32xf32> -> vector<16x32xf32>
    %11 = vector.broadcast %3 : vector<1x32xf32> to vector<16x32xf32>
    %12 = arith.addf %10, %11 : vector<16x32xf32>
    %cst_13 = arith.constant 0.000000e+00 : f32
    %13 = vector.broadcast %cst_13 : f32 to vector<16x32xf32>
    %14 = arith.maximumf %12, %13 : vector<16x32xf32>
    %cst_14 = arith.constant dense<0.000000e+00> : vector<16x128xf32>
    %15 = tpu.matmul %14, %0, %cst_14 {dimension_numbers = #tpu.dot_dimension_numbers<[1], [0], [0], [1], [0, 0, 1, 1], [], []>} : vector<16x32xf32>, vector<32x128xf32>, vector<16x128xf32> -> vector<16x128xf32>
    %16 = vector.broadcast %4 : vector<1x128xf32> to vector<16x128xf32>
    %17 = arith.addf %15, %16 : vector<16x128xf32>
    %cst_15 = arith.constant 0.000000e+00 : f32
    %18 = vector.broadcast %cst_15 : f32 to vector<2x32xf32>
    %cst_16 = arith.constant 0.000000e+00 : f32
    %19 = vector.broadcast %cst_16 : f32 to vector<2x32xf32>
    %20 = vector.extract_strided_slice %17 {offsets = [0, 0], sizes = [2, 128], strides = [1, 1]} : vector<16x128xf32> to vector<2x128xf32>
    %cst_17 = arith.constant dense<0.000000e+00> : vector<2x128xf32>
    %21 = tpu.matmul %18, %1, %cst_17 {dimension_numbers = #tpu.dot_dimension_numbers<[1], [0], [0], [1], [0, 0, 1, 1], [], []>} : vector<2x32xf32>, vector<32x128xf32>, vector<2x128xf32> -> vector<2x128xf32>
    %22 = arith.addf %20, %21 : vector<2x128xf32>
    %23 = vector.extract_strided_slice %22 {offsets = [0, 0], sizes = [2, 32], strides = [1, 1]} : vector<2x128xf32> to vector<2x32xf32>
    %24 = arith.negf %23 : vector<2x32xf32>
    %25 = math.exp %24 : vector<2x32xf32>
    %cst_18 = arith.constant 1.000000e+00 : f32
    %26 = vector.broadcast %cst_18 : f32 to vector<2x32xf32>
    %27 = arith.addf %26, %25 : vector<2x32xf32>
    %28 = arith.divf %26, %27 : vector<2x32xf32>
    %29 = vector.extract_strided_slice %22 {offsets = [0, 32], sizes = [2, 32], strides = [1, 1]} : vector<2x128xf32> to vector<2x32xf32>
    %30 = arith.negf %29 : vector<2x32xf32>
    %31 = math.exp %30 : vector<2x32xf32>
    %cst_19 = arith.constant 1.000000e+00 : f32
    %32 = vector.broadcast %cst_19 : f32 to vector<2x32xf32>
    %33 = arith.addf %32, %31 : vector<2x32xf32>
    %34 = arith.divf %32, %33 : vector<2x32xf32>
    %35 = vector.extract_strided_slice %22 {offsets = [0, 64], sizes = [2, 32], strides = [1, 1]} : vector<2x128xf32> to vector<2x32xf32>
    %36 = math.tanh %35 : vector<2x32xf32>
    %37 = vector.extract_strided_slice %22 {offsets = [0, 96], sizes = [2, 32], strides = [1, 1]} : vector<2x128xf32> to vector<2x32xf32>
    %38 = arith.negf %37 : vector<2x32xf32>
    %39 = math.exp %38 : vector<2x32xf32>
    %cst_20 = arith.constant 1.000000e+00 : f32
    %40 = vector.broadcast %cst_20 : f32 to vector<2x32xf32>
    %41 = arith.addf %40, %39 : vector<2x32xf32>
    %42 = arith.divf %40, %41 : vector<2x32xf32>
    %43 = arith.mulf %34, %19 : vector<2x32xf32>
    %44 = arith.mulf %28, %36 : vector<2x32xf32>
    %45 = arith.addf %43, %44 : vector<2x32xf32>
    %46 = math.tanh %45 : vector<2x32xf32>
    %47 = arith.mulf %42, %46 : vector<2x32xf32>
    %48 = vector.extract_strided_slice %17 {offsets = [2, 0], sizes = [2, 128], strides = [1, 1]} : vector<16x128xf32> to vector<2x128xf32>
    %cst_21 = arith.constant dense<0.000000e+00> : vector<2x128xf32>
    %49 = tpu.matmul %47, %1, %cst_21 {dimension_numbers = #tpu.dot_dimension_numbers<[1], [0], [0], [1], [0, 0, 1, 1], [], []>} : vector<2x32xf32>, vector<32x128xf32>, vector<2x128xf32> -> vector<2x128xf32>
    %50 = arith.addf %48, %49 : vector<2x128xf32>
    %51 = vector.extract_strided_slice %50 {offsets = [0, 0], sizes = [2, 32], strides = [1, 1]} : vector<2x128xf32> to vector<2x32xf32>
    %52 = arith.negf %51 : vector<2x32xf32>
    %53 = math.exp %52 : vector<2x32xf32>
    %cst_22 = arith.constant 1.000000e+00 : f32
    %54 = vector.broadcast %cst_22 : f32 to vector<2x32xf32>
    %55 = arith.addf %54, %53 : vector<2x32xf32>
    %56 = arith.divf %54, %55 : vector<2x32xf32>
    %57 = vector.extract_strided_slice %50 {offsets = [0, 32], sizes = [2, 32], strides = [1, 1]} : vector<2x128xf32> to vector<2x32xf32>
    %58 = arith.negf %57 : vector<2x32xf32>
    %59 = math.exp %58 : vector<2x32xf32>
    %cst_23 = arith.constant 1.000000e+00 : f32
    %60 = vector.broadcast %cst_23 : f32 to vector<2x32xf32>
    %61 = arith.addf %60, %59 : vector<2x32xf32>
    %62 = arith.divf %60, %61 : vector<2x32xf32>
    %63 = vector.extract_strided_slice %50 {offsets = [0, 64], sizes = [2, 32], strides = [1, 1]} : vector<2x128xf32> to vector<2x32xf32>
    %64 = math.tanh %63 : vector<2x32xf32>
    %65 = vector.extract_strided_slice %50 {offsets = [0, 96], sizes = [2, 32], strides = [1, 1]} : vector<2x128xf32> to vector<2x32xf32>
    %66 = arith.negf %65 : vector<2x32xf32>
    %67 = math.exp %66 : vector<2x32xf32>
    %cst_24 = arith.constant 1.000000e+00 : f32
    %68 = vector.broadcast %cst_24 : f32 to vector<2x32xf32>
    %69 = arith.addf %68, %67 : vector<2x32xf32>
    %70 = arith.divf %68, %69 : vector<2x32xf32>
    %71 = arith.mulf %62, %45 : vector<2x32xf32>
    %72 = arith.mulf %56, %64 : vector<2x32xf32>
    %73 = arith.addf %71, %72 : vector<2x32xf32>
    %74 = math.tanh %73 : vector<2x32xf32>
    %75 = arith.mulf %70, %74 : vector<2x32xf32>
    %76 = vector.extract_strided_slice %17 {offsets = [4, 0], sizes = [2, 128], strides = [1, 1]} : vector<16x128xf32> to vector<2x128xf32>
    %cst_25 = arith.constant dense<0.000000e+00> : vector<2x128xf32>
    %77 = tpu.matmul %75, %1, %cst_25 {dimension_numbers = #tpu.dot_dimension_numbers<[1], [0], [0], [1], [0, 0, 1, 1], [], []>} : vector<2x32xf32>, vector<32x128xf32>, vector<2x128xf32> -> vector<2x128xf32>
    %78 = arith.addf %76, %77 : vector<2x128xf32>
    %79 = vector.extract_strided_slice %78 {offsets = [0, 0], sizes = [2, 32], strides = [1, 1]} : vector<2x128xf32> to vector<2x32xf32>
    %80 = arith.negf %79 : vector<2x32xf32>
    %81 = math.exp %80 : vector<2x32xf32>
    %cst_26 = arith.constant 1.000000e+00 : f32
    %82 = vector.broadcast %cst_26 : f32 to vector<2x32xf32>
    %83 = arith.addf %82, %81 : vector<2x32xf32>
    %84 = arith.divf %82, %83 : vector<2x32xf32>
    %85 = vector.extract_strided_slice %78 {offsets = [0, 32], sizes = [2, 32], strides = [1, 1]} : vector<2x128xf32> to vector<2x32xf32>
    %86 = arith.negf %85 : vector<2x32xf32>
    %87 = math.exp %86 : vector<2x32xf32>
    %cst_27 = arith.constant 1.000000e+00 : f32
    %88 = vector.broadcast %cst_27 : f32 to vector<2x32xf32>
    %89 = arith.addf %88, %87 : vector<2x32xf32>
    %90 = arith.divf %88, %89 : vector<2x32xf32>
    %91 = vector.extract_strided_slice %78 {offsets = [0, 64], sizes = [2, 32], strides = [1, 1]} : vector<2x128xf32> to vector<2x32xf32>
    %92 = math.tanh %91 : vector<2x32xf32>
    %93 = vector.extract_strided_slice %78 {offsets = [0, 96], sizes = [2, 32], strides = [1, 1]} : vector<2x128xf32> to vector<2x32xf32>
    %94 = arith.negf %93 : vector<2x32xf32>
    %95 = math.exp %94 : vector<2x32xf32>
    %cst_28 = arith.constant 1.000000e+00 : f32
    %96 = vector.broadcast %cst_28 : f32 to vector<2x32xf32>
    %97 = arith.addf %96, %95 : vector<2x32xf32>
    %98 = arith.divf %96, %97 : vector<2x32xf32>
    %99 = arith.mulf %90, %73 : vector<2x32xf32>
    %100 = arith.mulf %84, %92 : vector<2x32xf32>
    %101 = arith.addf %99, %100 : vector<2x32xf32>
    %102 = math.tanh %101 : vector<2x32xf32>
    %103 = arith.mulf %98, %102 : vector<2x32xf32>
    %104 = vector.extract_strided_slice %17 {offsets = [6, 0], sizes = [2, 128], strides = [1, 1]} : vector<16x128xf32> to vector<2x128xf32>
    %cst_29 = arith.constant dense<0.000000e+00> : vector<2x128xf32>
    %105 = tpu.matmul %103, %1, %cst_29 {dimension_numbers = #tpu.dot_dimension_numbers<[1], [0], [0], [1], [0, 0, 1, 1], [], []>} : vector<2x32xf32>, vector<32x128xf32>, vector<2x128xf32> -> vector<2x128xf32>
    %106 = arith.addf %104, %105 : vector<2x128xf32>
    %107 = vector.extract_strided_slice %106 {offsets = [0, 0], sizes = [2, 32], strides = [1, 1]} : vector<2x128xf32> to vector<2x32xf32>
    %108 = arith.negf %107 : vector<2x32xf32>
    %109 = math.exp %108 : vector<2x32xf32>
    %cst_30 = arith.constant 1.000000e+00 : f32
    %110 = vector.broadcast %cst_30 : f32 to vector<2x32xf32>
    %111 = arith.addf %110, %109 : vector<2x32xf32>
    %112 = arith.divf %110, %111 : vector<2x32xf32>
    %113 = vector.extract_strided_slice %106 {offsets = [0, 32], sizes = [2, 32], strides = [1, 1]} : vector<2x128xf32> to vector<2x32xf32>
    %114 = arith.negf %113 : vector<2x32xf32>
    %115 = math.exp %114 : vector<2x32xf32>
    %cst_31 = arith.constant 1.000000e+00 : f32
    %116 = vector.broadcast %cst_31 : f32 to vector<2x32xf32>
    %117 = arith.addf %116, %115 : vector<2x32xf32>
    %118 = arith.divf %116, %117 : vector<2x32xf32>
    %119 = vector.extract_strided_slice %106 {offsets = [0, 64], sizes = [2, 32], strides = [1, 1]} : vector<2x128xf32> to vector<2x32xf32>
    %120 = math.tanh %119 : vector<2x32xf32>
    %121 = vector.extract_strided_slice %106 {offsets = [0, 96], sizes = [2, 32], strides = [1, 1]} : vector<2x128xf32> to vector<2x32xf32>
    %122 = arith.negf %121 : vector<2x32xf32>
    %123 = math.exp %122 : vector<2x32xf32>
    %cst_32 = arith.constant 1.000000e+00 : f32
    %124 = vector.broadcast %cst_32 : f32 to vector<2x32xf32>
    %125 = arith.addf %124, %123 : vector<2x32xf32>
    %126 = arith.divf %124, %125 : vector<2x32xf32>
    %127 = arith.mulf %118, %101 : vector<2x32xf32>
    %128 = arith.mulf %112, %120 : vector<2x32xf32>
    %129 = arith.addf %127, %128 : vector<2x32xf32>
    %130 = math.tanh %129 : vector<2x32xf32>
    %131 = arith.mulf %126, %130 : vector<2x32xf32>
    %132 = vector.extract_strided_slice %17 {offsets = [8, 0], sizes = [2, 128], strides = [1, 1]} : vector<16x128xf32> to vector<2x128xf32>
    %cst_33 = arith.constant dense<0.000000e+00> : vector<2x128xf32>
    %133 = tpu.matmul %131, %1, %cst_33 {dimension_numbers = #tpu.dot_dimension_numbers<[1], [0], [0], [1], [0, 0, 1, 1], [], []>} : vector<2x32xf32>, vector<32x128xf32>, vector<2x128xf32> -> vector<2x128xf32>
    %134 = arith.addf %132, %133 : vector<2x128xf32>
    %135 = vector.extract_strided_slice %134 {offsets = [0, 0], sizes = [2, 32], strides = [1, 1]} : vector<2x128xf32> to vector<2x32xf32>
    %136 = arith.negf %135 : vector<2x32xf32>
    %137 = math.exp %136 : vector<2x32xf32>
    %cst_34 = arith.constant 1.000000e+00 : f32
    %138 = vector.broadcast %cst_34 : f32 to vector<2x32xf32>
    %139 = arith.addf %138, %137 : vector<2x32xf32>
    %140 = arith.divf %138, %139 : vector<2x32xf32>
    %141 = vector.extract_strided_slice %134 {offsets = [0, 32], sizes = [2, 32], strides = [1, 1]} : vector<2x128xf32> to vector<2x32xf32>
    %142 = arith.negf %141 : vector<2x32xf32>
    %143 = math.exp %142 : vector<2x32xf32>
    %cst_35 = arith.constant 1.000000e+00 : f32
    %144 = vector.broadcast %cst_35 : f32 to vector<2x32xf32>
    %145 = arith.addf %144, %143 : vector<2x32xf32>
    %146 = arith.divf %144, %145 : vector<2x32xf32>
    %147 = vector.extract_strided_slice %134 {offsets = [0, 64], sizes = [2, 32], strides = [1, 1]} : vector<2x128xf32> to vector<2x32xf32>
    %148 = math.tanh %147 : vector<2x32xf32>
    %149 = vector.extract_strided_slice %134 {offsets = [0, 96], sizes = [2, 32], strides = [1, 1]} : vector<2x128xf32> to vector<2x32xf32>
    %150 = arith.negf %149 : vector<2x32xf32>
    %151 = math.exp %150 : vector<2x32xf32>
    %cst_36 = arith.constant 1.000000e+00 : f32
    %152 = vector.broadcast %cst_36 : f32 to vector<2x32xf32>
    %153 = arith.addf %152, %151 : vector<2x32xf32>
    %154 = arith.divf %152, %153 : vector<2x32xf32>
    %155 = arith.mulf %146, %129 : vector<2x32xf32>
    %156 = arith.mulf %140, %148 : vector<2x32xf32>
    %157 = arith.addf %155, %156 : vector<2x32xf32>
    %158 = math.tanh %157 : vector<2x32xf32>
    %159 = arith.mulf %154, %158 : vector<2x32xf32>
    %160 = vector.extract_strided_slice %17 {offsets = [10, 0], sizes = [2, 128], strides = [1, 1]} : vector<16x128xf32> to vector<2x128xf32>
    %cst_37 = arith.constant dense<0.000000e+00> : vector<2x128xf32>
    %161 = tpu.matmul %159, %1, %cst_37 {dimension_numbers = #tpu.dot_dimension_numbers<[1], [0], [0], [1], [0, 0, 1, 1], [], []>} : vector<2x32xf32>, vector<32x128xf32>, vector<2x128xf32> -> vector<2x128xf32>
    %162 = arith.addf %160, %161 : vector<2x128xf32>
    %163 = vector.extract_strided_slice %162 {offsets = [0, 0], sizes = [2, 32], strides = [1, 1]} : vector<2x128xf32> to vector<2x32xf32>
    %164 = arith.negf %163 : vector<2x32xf32>
    %165 = math.exp %164 : vector<2x32xf32>
    %cst_38 = arith.constant 1.000000e+00 : f32
    %166 = vector.broadcast %cst_38 : f32 to vector<2x32xf32>
    %167 = arith.addf %166, %165 : vector<2x32xf32>
    %168 = arith.divf %166, %167 : vector<2x32xf32>
    %169 = vector.extract_strided_slice %162 {offsets = [0, 32], sizes = [2, 32], strides = [1, 1]} : vector<2x128xf32> to vector<2x32xf32>
    %170 = arith.negf %169 : vector<2x32xf32>
    %171 = math.exp %170 : vector<2x32xf32>
    %cst_39 = arith.constant 1.000000e+00 : f32
    %172 = vector.broadcast %cst_39 : f32 to vector<2x32xf32>
    %173 = arith.addf %172, %171 : vector<2x32xf32>
    %174 = arith.divf %172, %173 : vector<2x32xf32>
    %175 = vector.extract_strided_slice %162 {offsets = [0, 64], sizes = [2, 32], strides = [1, 1]} : vector<2x128xf32> to vector<2x32xf32>
    %176 = math.tanh %175 : vector<2x32xf32>
    %177 = vector.extract_strided_slice %162 {offsets = [0, 96], sizes = [2, 32], strides = [1, 1]} : vector<2x128xf32> to vector<2x32xf32>
    %178 = arith.negf %177 : vector<2x32xf32>
    %179 = math.exp %178 : vector<2x32xf32>
    %cst_40 = arith.constant 1.000000e+00 : f32
    %180 = vector.broadcast %cst_40 : f32 to vector<2x32xf32>
    %181 = arith.addf %180, %179 : vector<2x32xf32>
    %182 = arith.divf %180, %181 : vector<2x32xf32>
    %183 = arith.mulf %174, %157 : vector<2x32xf32>
    %184 = arith.mulf %168, %176 : vector<2x32xf32>
    %185 = arith.addf %183, %184 : vector<2x32xf32>
    %186 = math.tanh %185 : vector<2x32xf32>
    %187 = arith.mulf %182, %186 : vector<2x32xf32>
    %188 = vector.extract_strided_slice %17 {offsets = [12, 0], sizes = [2, 128], strides = [1, 1]} : vector<16x128xf32> to vector<2x128xf32>
    %cst_41 = arith.constant dense<0.000000e+00> : vector<2x128xf32>
    %189 = tpu.matmul %187, %1, %cst_41 {dimension_numbers = #tpu.dot_dimension_numbers<[1], [0], [0], [1], [0, 0, 1, 1], [], []>} : vector<2x32xf32>, vector<32x128xf32>, vector<2x128xf32> -> vector<2x128xf32>
    %190 = arith.addf %188, %189 : vector<2x128xf32>
    %191 = vector.extract_strided_slice %190 {offsets = [0, 0], sizes = [2, 32], strides = [1, 1]} : vector<2x128xf32> to vector<2x32xf32>
    %192 = arith.negf %191 : vector<2x32xf32>
    %193 = math.exp %192 : vector<2x32xf32>
    %cst_42 = arith.constant 1.000000e+00 : f32
    %194 = vector.broadcast %cst_42 : f32 to vector<2x32xf32>
    %195 = arith.addf %194, %193 : vector<2x32xf32>
    %196 = arith.divf %194, %195 : vector<2x32xf32>
    %197 = vector.extract_strided_slice %190 {offsets = [0, 32], sizes = [2, 32], strides = [1, 1]} : vector<2x128xf32> to vector<2x32xf32>
    %198 = arith.negf %197 : vector<2x32xf32>
    %199 = math.exp %198 : vector<2x32xf32>
    %cst_43 = arith.constant 1.000000e+00 : f32
    %200 = vector.broadcast %cst_43 : f32 to vector<2x32xf32>
    %201 = arith.addf %200, %199 : vector<2x32xf32>
    %202 = arith.divf %200, %201 : vector<2x32xf32>
    %203 = vector.extract_strided_slice %190 {offsets = [0, 64], sizes = [2, 32], strides = [1, 1]} : vector<2x128xf32> to vector<2x32xf32>
    %204 = math.tanh %203 : vector<2x32xf32>
    %205 = vector.extract_strided_slice %190 {offsets = [0, 96], sizes = [2, 32], strides = [1, 1]} : vector<2x128xf32> to vector<2x32xf32>
    %206 = arith.negf %205 : vector<2x32xf32>
    %207 = math.exp %206 : vector<2x32xf32>
    %cst_44 = arith.constant 1.000000e+00 : f32
    %208 = vector.broadcast %cst_44 : f32 to vector<2x32xf32>
    %209 = arith.addf %208, %207 : vector<2x32xf32>
    %210 = arith.divf %208, %209 : vector<2x32xf32>
    %211 = arith.mulf %202, %185 : vector<2x32xf32>
    %212 = arith.mulf %196, %204 : vector<2x32xf32>
    %213 = arith.addf %211, %212 : vector<2x32xf32>
    %214 = math.tanh %213 : vector<2x32xf32>
    %215 = arith.mulf %210, %214 : vector<2x32xf32>
    %216 = vector.extract_strided_slice %17 {offsets = [14, 0], sizes = [2, 128], strides = [1, 1]} : vector<16x128xf32> to vector<2x128xf32>
    %cst_45 = arith.constant dense<0.000000e+00> : vector<2x128xf32>
    %217 = tpu.matmul %215, %1, %cst_45 {dimension_numbers = #tpu.dot_dimension_numbers<[1], [0], [0], [1], [0, 0, 1, 1], [], []>} : vector<2x32xf32>, vector<32x128xf32>, vector<2x128xf32> -> vector<2x128xf32>
    %218 = arith.addf %216, %217 : vector<2x128xf32>
    %219 = vector.extract_strided_slice %218 {offsets = [0, 0], sizes = [2, 32], strides = [1, 1]} : vector<2x128xf32> to vector<2x32xf32>
    %220 = arith.negf %219 : vector<2x32xf32>
    %221 = math.exp %220 : vector<2x32xf32>
    %cst_46 = arith.constant 1.000000e+00 : f32
    %222 = vector.broadcast %cst_46 : f32 to vector<2x32xf32>
    %223 = arith.addf %222, %221 : vector<2x32xf32>
    %224 = arith.divf %222, %223 : vector<2x32xf32>
    %225 = vector.extract_strided_slice %218 {offsets = [0, 32], sizes = [2, 32], strides = [1, 1]} : vector<2x128xf32> to vector<2x32xf32>
    %226 = arith.negf %225 : vector<2x32xf32>
    %227 = math.exp %226 : vector<2x32xf32>
    %cst_47 = arith.constant 1.000000e+00 : f32
    %228 = vector.broadcast %cst_47 : f32 to vector<2x32xf32>
    %229 = arith.addf %228, %227 : vector<2x32xf32>
    %230 = arith.divf %228, %229 : vector<2x32xf32>
    %231 = vector.extract_strided_slice %218 {offsets = [0, 64], sizes = [2, 32], strides = [1, 1]} : vector<2x128xf32> to vector<2x32xf32>
    %232 = math.tanh %231 : vector<2x32xf32>
    %233 = vector.extract_strided_slice %218 {offsets = [0, 96], sizes = [2, 32], strides = [1, 1]} : vector<2x128xf32> to vector<2x32xf32>
    %234 = arith.negf %233 : vector<2x32xf32>
    %235 = math.exp %234 : vector<2x32xf32>
    %cst_48 = arith.constant 1.000000e+00 : f32
    %236 = vector.broadcast %cst_48 : f32 to vector<2x32xf32>
    %237 = arith.addf %236, %235 : vector<2x32xf32>
    %238 = arith.divf %236, %237 : vector<2x32xf32>
    %239 = arith.mulf %230, %213 : vector<2x32xf32>
    %240 = arith.mulf %224, %232 : vector<2x32xf32>
    %241 = arith.addf %239, %240 : vector<2x32xf32>
    %242 = math.tanh %241 : vector<2x32xf32>
    %243 = arith.mulf %238, %242 : vector<2x32xf32>
    %244 = tpu.concatenate %47, %75, %103, %131, %159, %187, %215, %243 in 1 : vector<2x32xf32>, vector<2x32xf32>, vector<2x32xf32>, vector<2x32xf32>, vector<2x32xf32>, vector<2x32xf32>, vector<2x32xf32>, vector<2x32xf32> -> vector<2x256xf32>
    %245 = arith.truncf %244 : vector<2x256xf32> to vector<2x256xbf16>
    %cst_49 = arith.constant dense<0.000000e+00> : vector<2x256xf32>
    %246 = tpu.matmul %245, %7, %cst_49 {dimension_numbers = #tpu.dot_dimension_numbers<[1], [0], [0], [1], [0, 0, 1, 1], [], []>} : vector<2x256xbf16>, vector<256x256xbf16>, vector<2x256xf32> -> vector<2x256xf32>
    %247 = vector.broadcast %5 : vector<1x256xf32> to vector<2x256xf32>
    %248 = arith.addf %246, %247 : vector<2x256xf32>
    %cst_50 = arith.constant 0.000000e+00 : f32
    %249 = vector.broadcast %cst_50 : f32 to vector<2x256xf32>
    %250 = arith.maximumf %248, %249 : vector<2x256xf32>
    %251 = arith.truncf %250 : vector<2x256xf32> to vector<2x256xbf16>
    %cst_51 = arith.constant dense<0.000000e+00> : vector<2x128xf32>
    %252 = tpu.matmul %251, %8, %cst_51 {dimension_numbers = #tpu.dot_dimension_numbers<[1], [0], [0], [1], [0, 0, 1, 1], [], []>} : vector<2x256xbf16>, vector<256x128xbf16>, vector<2x128xf32> -> vector<2x128xf32>
    %253 = vector.broadcast %6 : vector<1x128xf32> to vector<2x128xf32>
    %254 = arith.addf %252, %253 : vector<2x128xf32>
    %255 = math.tanh %254 : vector<2x128xf32>
    %c0_52 = arith.constant 0 : index
    %c0_53 = arith.constant 0 : index
    %256 = vector.load %arg4[%c0_52, %c0_53] : memref<2x128xf32, #tpu.memory_space<vmem>>, vector<2x128xf32>
    tpu.vector_store %arg4[%c0_52, %c0_53], %255 {strides = array<i32>} : memref<2x128xf32, #tpu.memory_space<vmem>>, vector<2x128xf32>,
    return
  }
}

</mosaic_0001>

<llo_original>
// kernel: tpu_custom_call.1
$region0: #{tpu_custom_call.1}
  #allocation0 [shape = 'u32[]', space=smem, size = 0x4, offset = 0x4, fixed_abs, tag = 'smem constant byte address 0x4 - core index']
  #allocation1 [shape = 'u32[72,128]{1,0:T(1,128)}', space=vmem, size = 0x9000, scoped, tag = 'internal scratch']
  %s0 = inlined_call_operand.hbm [shape: f32[16,16], index: 0, kind: input, shape index: {}]
  %s1 = inlined_call_operand.hbm [shape: f32[80,128], index: 1, kind: input, shape index: {}]
  %s2 = inlined_call_operand.hbm [shape: f32[8,256], index: 2, kind: input, shape index: {}]
  %s3 = inlined_call_operand.hbm [shape: bf16[256,384], index: 3, kind: input, shape index: {}]
  %s4 = inlined_call_operand.hbm [shape: f32[2,128], index: 4, kind: output, shape index: {}]
  %s5 = sld [smem:[#allocation0]]
  $region42: #{tpu_custom_call.1} parent=0
    _
  %s7 = ssub.s32 1, %s5
  %s8 = scalar_select 0, %s7, %s5
  $region1: #{tpu_custom_call.1} parent=0
    #allocation2 [shape = 'u8[8192]{0}', space=vmem, size = 0x2000, scoped, tag = 'input window, operand 0, single buffered']
    #allocation3 [shape = 's32[1]{0}', space=sflag, size = 0x4, scoped, tag = 'scoped memory for tpu_custom_call.1']
    #allocation4 [shape = 's32[1]{0}', space=sflag, size = 0x4, scoped, tag = 'scoped memory for tpu_custom_call.1']
    #allocation5 [shape = 'u8[40960]{0}', space=vmem, size = 0xa000, scoped, tag = 'input window, operand 1, single buffered']
    #allocation6 [shape = 's32[1]{0}', space=sflag, size = 0x4, scoped, tag = 'scoped memory for tpu_custom_call.1']
    #allocation7 [shape = 'u8[8192]{0}', space=vmem, size = 0x2000, scoped, tag = 'input window, operand 2, single buffered']
    #allocation8 [shape = 'u8[196608]{0}', space=vmem, size = 0x30000, scoped, tag = 'input window, operand 3, single buffered']
    #allocation9 [shape = 's32[1]{0}', space=sflag, size = 0x4, scoped, tag = 'scoped memory for tpu_custom_call.1']
    #allocation10 [shape = 'u8[1024]{0}', space=vmem, size = 0x400, scoped, tag = 'output window, operand 0, single buffered']
    %9 = vsyncpa [#allocation3], 0
    %10 = vsyncpa [#allocation6], 0
    %11 = vsyncpa [#allocation9], 0
    %12 = vsyncpa [#allocation4], 0
    // Predicated region
    $region2: #{tpu_custom_call.1} parent=1 // pred_check
      _
    $region3: #{tpu_custom_call.1} parent=1 // pred_check_branch
      %14 = sbr.rel (0) target = $region5
    $region4: #{tpu_custom_call.1} parent=1 // pred_region
      %16 = vsyncadd [#allocation3], 0
      %s17 = sshll.u32 %s0, 4
      %s18 = int_to_ptr.hbm [resolvable:$true] %s17
      %s19 = sshll.u32 [#allocation2], 4
      %s20 = int_to_ptr.vmem [resolvable:$true] %s19
      %25 = dma.hbm_to_vmem [thread:$0]  %s18, 256, %s20, [#allocation3], 128, 128, 8
    $region5: #{tpu_custom_call.1} parent=1 // pred_fallthru
      _
    // Predicated region
    $region6: #{tpu_custom_call.1} parent=1 // pred_check
      _
    $region7: #{tpu_custom_call.1} parent=1 // pred_check_branch
      %27 = sbr.rel (0) target = $region9
    $region8: #{tpu_custom_call.1} parent=1 // pred_region
      %29 = vsyncadd [#allocation6], 0
      %s30 = sshll.u32 %s1, 4
      %s31 = int_to_ptr.hbm [resolvable:$true] %s30
      %s32 = sshll.u32 [#allocation5], 4
      %s33 = int_to_ptr.vmem [resolvable:$true] %s32
      %38 = dma.hbm_to_vmem [thread:$0]  %s31, 1280, %s33, [#allocation6], 128, 128, 8
    $region9: #{tpu_custom_call.1} parent=1 // pred_fallthru
      _
    // Predicated region
    $region10: #{tpu_custom_call.1} parent=1 // pred_check
      _
    $region11: #{tpu_custom_call.1} parent=1 // pred_check_branch
      %40 = sbr.rel (0) target = $region13
    $region12: #{tpu_custom_call.1} parent=1 // pred_region
      %42 = vsyncadd [#allocation6], 0
      %s44 = sshll.u32 %s2, 4
      %s45 = int_to_ptr.hbm [resolvable:$true] %s44
      %s46 = sshll.u32 [#allocation7], 4
      %s47 = int_to_ptr.vmem [resolvable:$true] %s46
      %49 = dma.hbm_to_vmem [thread:$0]  %s45, 256, %s47, [#allocation6]
    $region13: #{tpu_custom_call.1} parent=1 // pred_fallthru
      _
    // Predicated region
    $region14: #{tpu_custom_call.1} parent=1 // pred_check
      _
    $region15: #{tpu_custom_call.1} parent=1 // pred_check_branch
      %51 = sbr.rel (0) target = $region17
    $region16: #{tpu_custom_call.1} parent=1 // pred_region
      %53 = vsyncadd [#allocation9], 0
      %s54 = sshll.u32 %s3, 4
      %s55 = int_to_ptr.hbm [resolvable:$true] %s54
      %s56 = sshll.u32 [#allocation8], 4
      %s57 = int_to_ptr.vmem [resolvable:$true] %s56
      %62 = dma.hbm_to_vmem [thread:$0]  %s55, 6144, %s57, [#allocation9], 192, 192, 12
    $region17: #{tpu_custom_call.1} parent=1 // pred_fallthru
      _
    // Predicated region
    $region18: #{tpu_custom_call.1} parent=1 // pred_check
      _
    $region19: #{tpu_custom_call.1} parent=1 // pred_check_branch
      %64 = sbr.rel (0) target = $region21
    $region20: #{tpu_custom_call.1} parent=1 // pred_region
      %66 = dma.done [#allocation3], 256
    $region21: #{tpu_custom_call.1} parent=1 // pred_fallthru
      _
    // Predicated region
    $region22: #{tpu_custom_call.1} parent=1 // pred_check
      _
    $region23: #{tpu_custom_call.1} parent=1 // pred_check_branch
      %68 = sbr.rel (0) target = $region25
    $region24: #{tpu_custom_call.1} parent=1 // pred_region
      %70 = dma.done [#allocation6], 1280
    $region25: #{tpu_custom_call.1} parent=1 // pred_fallthru
      _
    // Predicated region
    $region26: #{tpu_custom_call.1} parent=1 // pred_check
      _
    $region27: #{tpu_custom_call.1} parent=1 // pred_check_branch
      %72 = sbr.rel (0) target = $region29
    $region28: #{tpu_custom_call.1} parent=1 // pred_region
      %74 = dma.done [#allocation6], 256
    $region29: #{tpu_custom_call.1} parent=1 // pred_fallthru
      _
    // Predicated region
    $region30: #{tpu_custom_call.1} parent=1 // pred_check
      _
    $region31: #{tpu_custom_call.1} parent=1 // pred_check_branch
      %76 = sbr.rel (0) target = $region33
    $region32: #{tpu_custom_call.1} parent=1 // pred_region
      %78 = dma.done [#allocation9], 6144
    $region33: #{tpu_custom_call.1} parent=1 // pred_fallthru
      _
    %v79 = vld [vmem:[#allocation5] sm:$0xff]
    %v80 = vld [vmem:[#allocation5 + $0x8] sm:$0xff]
    %v81 = vld [vmem:[#allocation5 + $0x10] sm:$0xff]
    %v82 = vld [vmem:[#allocation5 + $0x18] sm:$0xff]
    %v83 = vld [vmem:[#allocation5 + $0x20] sm:$0xff]
    %v84 = vld [vmem:[#allocation5 + $0x28] sm:$0xff]
    %v85 = vld [vmem:[#allocation5 + $0x30] sm:$0xff]
    %v86 = vld [vmem:[#allocation5 + $0x38] sm:$0xff]
    %v87 = vld [vmem:[#allocation5 + $0x40] sm:$0xff]
    %v88 = vld [vmem:[#allocation5 + $0x48] sm:$0xff]
    %v89 = vld [vmem:[#allocation7] ss:$0 sm:$0xff]
    %v90 = vld [vmem:[#allocation7 + $0x1] ss:$0 sm:$0xff]
    %s91 = scalar_lea.vmem [#allocation7], 2
    %v92 = vld [vmem:[%s91] ss:$8 sm:$0x3]
    %v93 = vld [vmem:[#allocation7 + $0x3] ss:$0 sm:$0xff]
    %v94 = vld [vmem:[#allocation8] sm:$0xff]
    %v95 = vld [vmem:[#allocation8 + $0xc] sm:$0xff]
    %v96 = vld [vmem:[#allocation8 + $0x18] sm:$0xff]
    %v97 = vld [vmem:[#allocation8 + $0x24] sm:$0xff]
    %v98 = vld [vmem:[#allocation8 + $0x30] sm:$0xff]
    %v99 = vld [vmem:[#allocation8 + $0x3c] sm:$0xff]
    %v100 = vld [vmem:[#allocation8 + $0x48] sm:$0xff]
    %v101 = vld [vmem:[#allocation8 + $0x54] sm:$0xff]
    %v102 = vld [vmem:[#allocation8 + $0x60] sm:$0xff]
    %v103 = vld [vmem:[#allocation8 + $0x6c] sm:$0xff]
    %v104 = vld [vmem:[#allocation8 + $0x78] sm:$0xff]
    %v105 = vld [vmem:[#allocation8 + $0x84] sm:$0xff]
    %v106 = vld [vmem:[#allocation8 + $0x90] sm:$0xff]
    %v107 = vld [vmem:[#allocation8 + $0x9c] sm:$0xff]
    %v108 = vld [vmem:[#allocation8 + $0xa8] sm:$0xff]
    %v109 = vld [vmem:[#allocation8 + $0xb4] sm:$0xff]
    %v110 = vld [vmem:[#allocation8 + $0xc0] sm:$0xff]
    %v111 = vld [vmem:[#allocation8 + $0xcc] sm:$0xff]
    %v112 = vld [vmem:[#allocation8 + $0xd8] sm:$0xff]
    %v113 = vld [vmem:[#allocation8 + $0xe4] sm:$0xff]
    %v114 = vld [vmem:[#allocation8 + $0xf0] sm:$0xff]
    %v115 = vld [vmem:[#allocation8 + $0xfc] sm:$0xff]
    %v116 = vld [vmem:[#allocation8 + $0x108] sm:$0xff]
    %v117 = vld [vmem:[#allocation8 + $0x114] sm:$0xff]
    %v118 = vld [vmem:[#allocation8 + $0x120] sm:$0xff]
    %v119 = vld [vmem:[#allocation8 + $0x12c] sm:$0xff]
    %v120 = vld [vmem:[#allocation8 + $0x138] sm:$0xff]
    %v121 = vld [vmem:[#allocation8 + $0x144] sm:$0xff]
    %v122 = vld [vmem:[#allocation8 + $0x150] sm:$0xff]
    %v123 = vld [vmem:[#allocation8 + $0x15c] sm:$0xff]
    %v124 = vld [vmem:[#allocation8 + $0x168] sm:$0xff]
    %v125 = vld [vmem:[#allocation8 + $0x174] sm:$0xff]
    %v126 = vld [vmem:[#allocation8 + $0x8] sm:$0xf]
    %v127 = vld [vmem:[#allocation8 + $0x14] sm:$0xf]
    %v128 = vld [vmem:[#allocation8 + $0x20] sm:$0xf]
    %v129 = vld [vmem:[#allocation8 + $0x2c] sm:$0xf]
    %v130 = vld [vmem:[#allocation8 + $0x38] sm:$0xf]
    %v131 = vld [vmem:[#allocation8 + $0x44] sm:$0xf]
    %v132 = vld [vmem:[#allocation8 + $0x50] sm:$0xf]
    %v133 = vld [vmem:[#allocation8 + $0x5c] sm:$0xf]
    %v134 = vld [vmem:[#allocation8 + $0x68] sm:$0xf]
    %v135 = vld [vmem:[#allocation8 + $0x74] sm:$0xf]
    %v136 = vld [vmem:[#allocation8 + $0x80] sm:$0xf]
    %v137 = vld [vmem:[#allocation8 + $0x8c] sm:$0xf]
    %v138 = vld [vmem:[#allocation8 + $0x98] sm:$0xf]
    %v139 = vld [vmem:[#allocation8 + $0xa4] sm:$0xf]
    %v140 = vld [vmem:[#allocation8 + $0xb0] sm:$0xf]
    %v141 = vld [vmem:[#allocation8 + $0xbc] sm:$0xf]
    %v142 = vld [vmem:[#allocation8 + $0xc8] sm:$0xf]
    %v143 = vld [vmem:[#allocation8 + $0xd4] sm:$0xf]
    %v144 = vld [vmem:[#allocation8 + $0xe0] sm:$0xf]
    %v145 = vld [vmem:[#allocation8 + $0xec] sm:$0xf]
    %v146 = vld [vmem:[#allocation8 + $0xf8] sm:$0xf]
    %v147 = vld [vmem:[#allocation8 + $0x104] sm:$0xf]
    %v148 = vld [vmem:[#allocation8 + $0x110] sm:$0xf]
    %v149 = vld [vmem:[#allocation8 + $0x11c] sm:$0xf]
    %v150 = vld [vmem:[#allocation8 + $0x128] sm:$0xf]
    %v151 = vld [vmem:[#allocation8 + $0x134] sm:$0xf]
    %v152 = vld [vmem:[#allocation8 + $0x140] sm:$0xf]
    %v153 = vld [vmem:[#allocation8 + $0x14c] sm:$0xf]
    %v154 = vld [vmem:[#allocation8 + $0x158] sm:$0xf]
    %v155 = vld [vmem:[#allocation8 + $0x164] sm:$0xf]
    %v156 = vld [vmem:[#allocation8 + $0x170] sm:$0xf]
    %v157 = vld [vmem:[#allocation8 + $0x17c] sm:$0xf]
    %v158 = vld [vmem:[#allocation2] sm:$0xff]
    %v159 = vld [vmem:[#allocation2 + $0x8] sm:$0xff]
    %vm160 = vcmask 130048
    %v162 = vsel %vm160, %v158, 0
    %v165 = vsel %vm160, %v159, 0
    %167 = vmatpush.msra.mxu0 0.0
    %168 = vmatpush.msra.mxu0 0.0
    %169 = vmatpush.msra.mxu0 0.0
    %170 = vmatpush.msra.mxu0 0.0
    %171 = vmatpush.msra.mxu0 0.0
    %172 = vmatpush.msra.mxu0 0.0
    %173 = vmatpush.msra.mxu0 0.0
    %174 = vmatpush.msra.mxu0 0.0
    %175 = vmatpush.msra.mxu0 0.0
    %176 = vmatpush.msra.mxu0 0.0
    %177 = vmatpush.msra.mxu0 0.0
    %178 = vmatpush.msra.mxu0 0.0
    %179 = vmatpush.msra.mxu0 0.0
    %180 = vmatpush.msra.mxu0 0.0
    %181 = vmatpush.msra.mxu0 %v88
    %182 = vmatpush.msra.mxu0 %v87
    %183 = vmatmul.f32.gmra.mxu0 %v162
    %v184 = vpop.f32.mrf.mxu0
    %v185 = vadd.f32 %v89, %v184
    %186 = vmatmul.f32.gmra.mxu0 %v165
    %v187 = vpop.f32.mrf.mxu0
    %v188 = vadd.f32 %v89, %v187
    %189 = vdwg.mxu0
    %v190 = vmax.f32 %v185, 0.0
    %v191 = vmax.f32 %v188, 0.0
    %vm192 = vcmask 261120
    %v194 = vsel %vm192, %v190, 0
    %v197 = vsel %vm192, %v191, 0
    %199 = vmatpush.msra.mxu0 0.0
    %200 = vmatpush.msra.mxu0 0.0
    %201 = vmatpush.msra.mxu0 0.0
    %202 = vmatpush.msra.mxu0 0.0
    %203 = vmatpush.msra.mxu0 0.0
    %204 = vmatpush.msra.mxu0 0.0
    %205 = vmatpush.msra.mxu0 0.0
    %206 = vmatpush.msra.mxu0 0.0
    %207 = vmatpush.msra.mxu0 0.0
    %208 = vmatpush.msra.mxu0 0.0
    %209 = vmatpush.msra.mxu0 0.0
    %210 = vmatpush.msra.mxu0 0.0
    %211 = vmatpush.msra.mxu0 %v82
    %212 = vmatpush.msra.mxu0 %v81
    %213 = vmatpush.msra.mxu0 %v80
    %214 = vmatpush.msra.mxu0 %v79
    %215 = vmatmul.f32.gmra.mxu0 %v194
    %v216 = vpop.f32.mrf.mxu0
    %v217 = vadd.f32 %v90, %v216
    %218 = vmatmul.f32.gmra.mxu0 %v197
    %v219 = vpop.f32.mrf.mxu0
    %v220 = vadd.f32 %v90, %v219
    %221 = vdwg.mxu0
    %v223 = vsel %vm192, 0.0, 0
    %225 = vmatpush.msra.mxu0 0.0
    %226 = vmatpush.msra.mxu0 0.0
    %227 = vmatpush.msra.mxu0 0.0
    %228 = vmatpush.msra.mxu0 0.0
    %229 = vmatpush.msra.mxu0 0.0
    %230 = vmatpush.msra.mxu0 0.0
    %231 = vmatpush.msra.mxu0 0.0
    %232 = vmatpush.msra.mxu0 0.0
    %233 = vmatpush.msra.mxu0 0.0
    %234 = vmatpush.msra.mxu0 0.0
    %235 = vmatpush.msra.mxu0 0.0
    %236 = vmatpush.msra.mxu0 0.0
    %237 = vmatpush.msra.mxu0 %v86
    %238 = vmatpush.msra.mxu0 %v85
    %239 = vmatpush.msra.mxu0 %v84
    %240 = vmatpush.msra.mxu0 %v83
    %241 = vmatmul.f32.gmra.mxu0 %v223
    %v242 = vpop.f32.mrf.mxu0
    %v243 = vadd.f32 0.0, %v242
    %244 = vdwg.mxu0
    %v245 = vadd.f32 %v217, %v243
    %v246 = vxor.u32 %v245, 2147483648
    %v247 = vmul.f32 %v246, 1.442695
    %v248 = vpow.pop %v247
    %v249 = vadd.f32 %v248, 1.0
    %v250 = vrcp.pop %v249
    %v251 = vmul.f32 %v249, %v250
    %v252 = vsub.f32 1.0, %v251
    %v253 = vmul.f32 %v250, %v252
    %v254 = vadd.f32 %v250, %v253
    %vm255 = vweird.f32 %v249
    %vm256 = vweird.f32 %v250
    %vm257 = vmor %vm255, %vm256
    %v258 = vsel %vm257, %v250, %v254
    %v259 = vand.u32 2147483647, %v249
    %vm260 = vcmp.eq.f32.partialorder %v259, 8.507059e+37
    %v261 = vand.u32 %v249, 2147483648
    %v262 = vor.u32 1.1754944e-38, %v261
    %v263 = vsel %vm260, %v262, %v258
    %v264 = vmul.f32 1.0, %v263
    %v265 = vtanh.pop %v245
    %v266 = vmul.f32 %v264, 0.0
    %268 = vrot.lane.b32.xlu0 %v265, 64
    %v269 = vpop.permute.xlu0 %268
    %v271 = vmul.f32 %v264, %v269
    %273 = vrot.lane.b32.xlu0 %v271, 32
    %v274 = vpop.permute.xlu0 %273
    %v276 = vadd.f32 %v266, %v274
    %v277 = vtanh.pop %v276
    %279 = vrot.lane.b32.xlu0 %v277, 64
    %v280 = vpop.permute.xlu0 %279
    %v282 = vmul.f32 %v264, %v280
    %284 = vrot.lane.b32.xlu0 %v282, 32
    %v285 = vpop.permute.xlu0 %284
    %v286 = vsel %vm192, %v285, 0
    %288 = vmatpush.msra.mxu0 0.0
    %289 = vmatpush.msra.mxu0 0.0
    %290 = vmatpush.msra.mxu0 0.0
    %291 = vmatpush.msra.mxu0 0.0
    %292 = vmatpush.msra.mxu0 0.0
    %293 = vmatpush.msra.mxu0 0.0
    %294 = vmatpush.msra.mxu0 0.0
    %295 = vmatpush.msra.mxu0 0.0
    %296 = vmatpush.msra.mxu0 0.0
    %297 = vmatpush.msra.mxu0 0.0
    %298 = vmatpush.msra.mxu0 0.0
    %299 = vmatpush.msra.mxu0 0.0
    %300 = vmatpush.msra.mxu0 %v86
    %301 = vmatpush.msra.mxu0 %v85
    %302 = vmatpush.msra.mxu0 %v84
    %303 = vmatpush.msra.mxu0 %v83
    %304 = vmatmul.f32.gmra.mxu0 %v286
    %v305 = vpop.f32.mrf.mxu0
    %v306 = vadd.f32 0.0, %v305
    %307 = vdwg.mxu0
    %v309 = vrot.slane %v306, 6
    %v311 = vadd.f32 %v217, %v309
    %v312 = vxor.u32 %v311, 2147483648
    %v313 = vmul.f32 %v312, 1.442695
    %v314 = vpow.pop %v313
    %v315 = vadd.f32 %v314, 1.0
    %v316 = vrcp.pop %v315
    %v317 = vmul.f32 %v315, %v316
    %v318 = vsub.f32 1.0, %v317
    %v319 = vmul.f32 %v316, %v318
    %v320 = vadd.f32 %v316, %v319
    %vm321 = vweird.f32 %v315
    %vm322 = vweird.f32 %v316
    %vm323 = vmor %vm321, %vm322
    %v324 = vsel %vm323, %v316, %v320
    %v325 = vand.u32 2147483647, %v315
    %vm326 = vcmp.eq.f32.partialorder %v325, 8.507059e+37
    %v327 = vand.u32 %v315, 2147483648
    %v328 = vor.u32 1.1754944e-38, %v327
    %v329 = vsel %vm326, %v328, %v324
    %v330 = vmul.f32 1.0, %v329
    %v331 = vtanh.pop %v311
    %v333 = vrot.slane %v276, 6
    %v335 = vmul.f32 %v330, %v333
    %337 = vrot.lane.b32.xlu0 %v331, 64
    %v338 = vpop.permute.xlu0 %337
    %v340 = vmul.f32 %v330, %v338
    %342 = vrot.lane.b32.xlu0 %v340, 32
    %v343 = vpop.permute.xlu0 %342
    %v345 = vadd.f32 %v335, %v343
    %v346 = vtanh.pop %v345
    %348 = vrot.lane.b32.xlu0 %v346, 64
    %v349 = vpop.permute.xlu0 %348
    %v351 = vmul.f32 %v330, %v349
    %v353 = vrot.slane %v351, 2
    %354 = vrot.lane.b32.xlu0 %v353, 32
    %v355 = vpop.permute.xlu0 %354
    %v356 = vsel %vm192, %v355, 0
    %358 = vmatpush.msra.mxu0 0.0
    %359 = vmatpush.msra.mxu0 0.0
    %360 = vmatpush.msra.mxu0 0.0
    %361 = vmatpush.msra.mxu0 0.0
    %362 = vmatpush.msra.mxu0 0.0
    %363 = vmatpush.msra.mxu0 0.0
    %364 = vmatpush.msra.mxu0 0.0
    %365 = vmatpush.msra.mxu0 0.0
    %366 = vmatpush.msra.mxu0 0.0
    %367 = vmatpush.msra.mxu0 0.0
    %368 = vmatpush.msra.mxu0 0.0
    %369 = vmatpush.msra.mxu0 0.0
    %370 = vmatpush.msra.mxu0 %v86
    %371 = vmatpush.msra.mxu0 %v85
    %372 = vmatpush.msra.mxu0 %v84
    %373 = vmatpush.msra.mxu0 %v83
    %374 = vmatmul.f32.gmra.mxu0 %v356
    %v375 = vpop.f32.mrf.mxu0
    %v376 = vadd.f32 0.0, %v375
    %377 = vdwg.mxu0
    %v379 = vrot.slane %v376, 4
    %v381 = vadd.f32 %v217, %v379
    %v382 = vxor.u32 %v381, 2147483648
    %v383 = vmul.f32 %v382, 1.442695
    %v384 = vpow.pop %v383
    %v385 = vadd.f32 %v384, 1.0
    %v386 = vrcp.pop %v385
    %v387 = vmul.f32 %v385, %v386
    %v388 = vsub.f32 1.0, %v387
    %v389 = vmul.f32 %v386, %v388
    %v390 = vadd.f32 %v386, %v389
    %vm391 = vweird.f32 %v385
    %vm392 = vweird.f32 %v386
    %vm393 = vmor %vm391, %vm392
    %v394 = vsel %vm393, %v386, %v390
    %v395 = vand.u32 2147483647, %v385
    %vm396 = vcmp.eq.f32.partialorder %v395, 8.507059e+37
    %v397 = vand.u32 %v385, 2147483648
    %v398 = vor.u32 1.1754944e-38, %v397
    %v399 = vsel %vm396, %v398, %v394
    %v400 = vmul.f32 1.0, %v399
    %v401 = vtanh.pop %v381
    %v403 = vrot.slane %v345, 6
    %v405 = vmul.f32 %v400, %v403
    %407 = vrot.lane.b32.xlu0 %v401, 64
    %v408 = vpop.permute.xlu0 %407
    %v410 = vmul.f32 %v400, %v408
    %412 = vrot.lane.b32.xlu0 %v410, 32
    %v413 = vpop.permute.xlu0 %412
    %v415 = vadd.f32 %v405, %v413
    %v416 = vtanh.pop %v415
    %418 = vrot.lane.b32.xlu0 %v416, 64
    %v419 = vpop.permute.xlu0 %418
    %v421 = vmul.f32 %v400, %v419
    %v423 = vrot.slane %v421, 4
    %424 = vrot.lane.b32.xlu0 %v423, 32
    %v425 = vpop.permute.xlu0 %424
    %v426 = vsel %vm192, %v425, 0
    %428 = vmatpush.msra.mxu0 0.0
    %429 = vmatpush.msra.mxu0 0.0
    %430 = vmatpush.msra.mxu0 0.0
    %431 = vmatpush.msra.mxu0 0.0
    %432 = vmatpush.msra.mxu0 0.0
    %433 = vmatpush.msra.mxu0 0.0
    %434 = vmatpush.msra.mxu0 0.0
    %435 = vmatpush.msra.mxu0 0.0
    %436 = vmatpush.msra.mxu0 0.0
    %437 = vmatpush.msra.mxu0 0.0
    %438 = vmatpush.msra.mxu0 0.0
    %439 = vmatpush.msra.mxu0 0.0
    %440 = vmatpush.msra.mxu0 %v86
    %441 = vmatpush.msra.mxu0 %v85
    %442 = vmatpush.msra.mxu0 %v84
    %443 = vmatpush.msra.mxu0 %v83
    %444 = vmatmul.f32.gmra.mxu0 %v426
    %v445 = vpop.f32.mrf.mxu0
    %v446 = vadd.f32 0.0, %v445
    %447 = vdwg.mxu0
    %v449 = vrot.slane %v446, 2
    %v451 = vadd.f32 %v217, %v449
    %v452 = vxor.u32 %v451, 2147483648
    %v453 = vmul.f32 %v452, 1.442695
    %v454 = vpow.pop %v453
    %v455 = vadd.f32 %v454, 1.0
    %v456 = vrcp.pop %v455
    %v457 = vmul.f32 %v455, %v456
    %v458 = vsub.f32 1.0, %v457
    %v459 = vmul.f32 %v456, %v458
    %v460 = vadd.f32 %v456, %v459
    %vm461 = vweird.f32 %v455
    %vm462 = vweird.f32 %v456
    %vm463 = vmor %vm461, %vm462
    %v464 = vsel %vm463, %v456, %v460
    %v465 = vand.u32 2147483647, %v455
    %vm466 = vcmp.eq.f32.partialorder %v465, 8.507059e+37
    %v467 = vand.u32 %v455, 2147483648
    %v468 = vor.u32 1.1754944e-38, %v467
    %v469 = vsel %vm466, %v468, %v464
    %v470 = vmul.f32 1.0, %v469
    %v471 = vtanh.pop %v451
    %v473 = vrot.slane %v415, 6
    %v475 = vmul.f32 %v470, %v473
    %477 = vrot.lane.b32.xlu0 %v471, 64
    %v478 = vpop.permute.xlu0 %477
    %v480 = vmul.f32 %v470, %v478
    %482 = vrot.lane.b32.xlu0 %v480, 32
    %v483 = vpop.permute.xlu0 %482
    %v485 = vadd.f32 %v475, %v483
    %v486 = vtanh.pop %v485
    %488 = vrot.lane.b32.xlu0 %v486, 64
    %v489 = vpop.permute.xlu0 %488
    %v491 = vmul.f32 %v470, %v489
    %v493 = vrot.slane %v491, 6
    %494 = vrot.lane.b32.xlu0 %v493, 32
    %v495 = vpop.permute.xlu0 %494
    %v496 = vsel %vm192, %v495, 0
    %498 = vmatpush.msra.mxu0 0.0
    %499 = vmatpush.msra.mxu0 0.0
    %500 = vmatpush.msra.mxu0 0.0
    %501 = vmatpush.msra.mxu0 0.0
    %502 = vmatpush.msra.mxu0 0.0
    %503 = vmatpush.msra.mxu0 0.0
    %504 = vmatpush.msra.mxu0 0.0
    %505 = vmatpush.msra.mxu0 0.0
    %506 = vmatpush.msra.mxu0 0.0
    %507 = vmatpush.msra.mxu0 0.0
    %508 = vmatpush.msra.mxu0 0.0
    %509 = vmatpush.msra.mxu0 0.0
    %510 = vmatpush.msra.mxu0 %v86
    %511 = vmatpush.msra.mxu0 %v85
    %512 = vmatpush.msra.mxu0 %v84
    %513 = vmatpush.msra.mxu0 %v83
    %514 = vmatmul.f32.gmra.mxu0 %v496
    %v515 = vpop.f32.mrf.mxu0
    %v516 = vadd.f32 0.0, %v515
    %517 = vdwg.mxu0
    %v518 = vadd.f32 %v220, %v516
    %v519 = vxor.u32 %v518, 2147483648
    %v520 = vmul.f32 %v519, 1.442695
    %v521 = vpow.pop %v520
    %v522 = vadd.f32 %v521, 1.0
    %v523 = vrcp.pop %v522
    %v524 = vmul.f32 %v522, %v523
    %v525 = vsub.f32 1.0, %v524
    %v526 = vmul.f32 %v523, %v525
    %v527 = vadd.f32 %v523, %v526
    %vm528 = vweird.f32 %v522
    %vm529 = vweird.f32 %v523
    %vm530 = vmor %vm528, %vm529
    %v531 = vsel %vm530, %v523, %v527
    %v532 = vand.u32 2147483647, %v522
    %vm533 = vcmp.eq.f32.partialorder %v532, 8.507059e+37
    %v534 = vand.u32 %v522, 2147483648
    %v535 = vor.u32 1.1754944e-38, %v534
    %v536 = vsel %vm533, %v535, %v531
    %v537 = vmul.f32 1.0, %v536
    %v538 = vtanh.pop %v518
    %v540 = vrot.slane %v485, 6
    %v542 = vmul.f32 %v537, %v540
    %544 = vrot.lane.b32.xlu0 %v538, 64
    %v545 = vpop.permute.xlu0 %544
    %v547 = vmul.f32 %v537, %v545
    %549 = vrot.lane.b32.xlu0 %v547, 32
    %v550 = vpop.permute.xlu0 %549
    %v552 = vadd.f32 %v542, %v550
    %v553 = vtanh.pop %v552
    %555 = vrot.lane.b32.xlu0 %v553, 64
    %v556 = vpop.permute.xlu0 %555
    %v558 = vmul.f32 %v537, %v556
    %560 = vrot.lane.b32.xlu0 %v558, 32
    %v561 = vpop.permute.xlu0 %560
    %v562 = vsel %vm192, %v561, 0
    %564 = vmatpush.msra.mxu0 0.0
    %565 = vmatpush.msra.mxu0 0.0
    %566 = vmatpush.msra.mxu0 0.0
    %567 = vmatpush.msra.mxu0 0.0
    %568 = vmatpush.msra.mxu0 0.0
    %569 = vmatpush.msra.mxu0 0.0
    %570 = vmatpush.msra.mxu0 0.0
    %571 = vmatpush.msra.mxu0 0.0
    %572 = vmatpush.msra.mxu0 0.0
    %573 = vmatpush.msra.mxu0 0.0
    %574 = vmatpush.msra.mxu0 0.0
    %575 = vmatpush.msra.mxu0 0.0
    %576 = vmatpush.msra.mxu0 %v86
    %577 = vmatpush.msra.mxu0 %v85
    %578 = vmatpush.msra.mxu0 %v84
    %579 = vmatpush.msra.mxu0 %v83
    %580 = vmatmul.f32.gmra.mxu0 %v562
    %v581 = vpop.f32.mrf.mxu0
    %v582 = vadd.f32 0.0, %v581
    %583 = vdwg.mxu0
    %v585 = vrot.slane %v582, 6
    %v587 = vadd.f32 %v220, %v585
    %v588 = vxor.u32 %v587, 2147483648
    %v589 = vmul.f32 %v588, 1.442695
    %v590 = vpow.pop %v589
    %v591 = vadd.f32 %v590, 1.0
    %v592 = vrcp.pop %v591
    %v593 = vmul.f32 %v591, %v592
    %v594 = vsub.f32 1.0, %v593
    %v595 = vmul.f32 %v592, %v594
    %v596 = vadd.f32 %v592, %v595
    %vm597 = vweird.f32 %v591
    %vm598 = vweird.f32 %v592
    %vm599 = vmor %vm597, %vm598
    %v600 = vsel %vm599, %v592, %v596
    %v601 = vand.u32 2147483647, %v591
    %vm602 = vcmp.eq.f32.partialorder %v601, 8.507059e+37
    %v603 = vand.u32 %v591, 2147483648
    %v604 = vor.u32 1.1754944e-38, %v603
    %v605 = vsel %vm602, %v604, %v600
    %v606 = vmul.f32 1.0, %v605
    %v607 = vtanh.pop %v587
    %v609 = vrot.slane %v552, 6
    %v611 = vmul.f32 %v606, %v609
    %613 = vrot.lane.b32.xlu0 %v607, 64
    %v614 = vpop.permute.xlu0 %613
    %v616 = vmul.f32 %v606, %v614
    %618 = vrot.lane.b32.xlu0 %v616, 32
    %v619 = vpop.permute.xlu0 %618
    %v621 = vadd.f32 %v611, %v619
    %v622 = vtanh.pop %v621
    %624 = vrot.lane.b32.xlu0 %v622, 64
    %v625 = vpop.permute.xlu0 %624
    %v627 = vmul.f32 %v606, %v625
    %v629 = vrot.slane %v627, 2
    %630 = vrot.lane.b32.xlu0 %v629, 32
    %v631 = vpop.permute.xlu0 %630
    %v632 = vsel %vm192, %v631, 0
    %634 = vmatpush.msra.mxu0 0.0
    %635 = vmatpush.msra.mxu0 0.0
    %636 = vmatpush.msra.mxu0 0.0
    %637 = vmatpush.msra.mxu0 0.0
    %638 = vmatpush.msra.mxu0 0.0
    %639 = vmatpush.msra.mxu0 0.0
    %640 = vmatpush.msra.mxu0 0.0
    %641 = vmatpush.msra.mxu0 0.0
    %642 = vmatpush.msra.mxu0 0.0
    %643 = vmatpush.msra.mxu0 0.0
    %644 = vmatpush.msra.mxu0 0.0
    %645 = vmatpush.msra.mxu0 0.0
    %646 = vmatpush.msra.mxu0 %v86
    %647 = vmatpush.msra.mxu0 %v85
    %648 = vmatpush.msra.mxu0 %v84
    %649 = vmatpush.msra.mxu0 %v83
    %650 = vmatmul.f32.gmra.mxu0 %v632
    %v651 = vpop.f32.mrf.mxu0
    %v652 = vadd.f32 0.0, %v651
    %653 = vdwg.mxu0
    %v655 = vrot.slane %v652, 4
    %v657 = vadd.f32 %v220, %v655
    %v658 = vxor.u32 %v657, 2147483648
    %v659 = vmul.f32 %v658, 1.442695
    %v660 = vpow.pop %v659
    %v661 = vadd.f32 %v660, 1.0
    %v662 = vrcp.pop %v661
    %v663 = vmul.f32 %v661, %v662
    %v664 = vsub.f32 1.0, %v663
    %v665 = vmul.f32 %v662, %v664
    %v666 = vadd.f32 %v662, %v665
    %vm667 = vweird.f32 %v661
    %vm668 = vweird.f32 %v662
    %vm669 = vmor %vm667, %vm668
    %v670 = vsel %vm669, %v662, %v666
    %v671 = vand.u32 2147483647, %v661
    %vm672 = vcmp.eq.f32.partialorder %v671, 8.507059e+37
    %v673 = vand.u32 %v661, 2147483648
    %v674 = vor.u32 1.1754944e-38, %v673
    %v675 = vsel %vm672, %v674, %v670
    %v676 = vmul.f32 1.0, %v675
    %v677 = vtanh.pop %v657
    %v679 = vrot.slane %v621, 6
    %v681 = vmul.f32 %v676, %v679
    %683 = vrot.lane.b32.xlu0 %v677, 64
    %v684 = vpop.permute.xlu0 %683
    %v686 = vmul.f32 %v676, %v684
    %688 = vrot.lane.b32.xlu0 %v686, 32
    %v689 = vpop.permute.xlu0 %688
    %v691 = vadd.f32 %v681, %v689
    %v692 = vtanh.pop %v691
    %694 = vrot.lane.b32.xlu0 %v692, 64
    %v695 = vpop.permute.xlu0 %694
    %v697 = vmul.f32 %v676, %v695
    %v699 = vrot.slane %v697, 4
    %700 = vrot.lane.b32.xlu0 %v699, 32
    %v701 = vpop.permute.xlu0 %700
    %v702 = vsel %vm192, %v701, 0
    %704 = vmatpush.msra.mxu0 0.0
    %705 = vmatpush.msra.mxu0 0.0
    %706 = vmatpush.msra.mxu0 0.0
    %707 = vmatpush.msra.mxu0 0.0
    %708 = vmatpush.msra.mxu0 0.0
    %709 = vmatpush.msra.mxu0 0.0
    %710 = vmatpush.msra.mxu0 0.0
    %711 = vmatpush.msra.mxu0 0.0
    %712 = vmatpush.msra.mxu0 0.0
    %713 = vmatpush.msra.mxu0 0.0
    %714 = vmatpush.msra.mxu0 0.0
    %715 = vmatpush.msra.mxu0 0.0
    %716 = vmatpush.msra.mxu0 %v86
    %717 = vmatpush.msra.mxu0 %v85
    %718 = vmatpush.msra.mxu0 %v84
    %719 = vmatpush.msra.mxu0 %v83
    %720 = vmatmul.f32.gmra.mxu0 %v702
    %v721 = vpop.f32.mrf.mxu0
    %v722 = vadd.f32 0.0, %v721
    %723 = vdwg.mxu0
    %v725 = vrot.slane %v722, 2
    %v727 = vadd.f32 %v220, %v725
    %v728 = vxor.u32 %v727, 2147483648
    %v729 = vmul.f32 %v728, 1.442695
    %v730 = vpow.pop %v729
    %v731 = vadd.f32 %v730, 1.0
    %v732 = vrcp.pop %v731
    %v733 = vmul.f32 %v731, %v732
    %v734 = vsub.f32 1.0, %v733
    %v735 = vmul.f32 %v732, %v734
    %v736 = vadd.f32 %v732, %v735
    %vm737 = vweird.f32 %v731
    %vm738 = vweird.f32 %v732
    %vm739 = vmor %vm737, %vm738
    %v740 = vsel %vm739, %v732, %v736
    %v741 = vand.u32 2147483647, %v731
    %vm742 = vcmp.eq.f32.partialorder %v741, 8.507059e+37
    %v743 = vand.u32 %v731, 2147483648
    %v744 = vor.u32 1.1754944e-38, %v743
    %v745 = vsel %vm742, %v744, %v740
    %v746 = vmul.f32 1.0, %v745
    %v747 = vtanh.pop %v727
    %v749 = vrot.slane %v691, 6
    %v751 = vmul.f32 %v746, %v749
    %753 = vrot.lane.b32.xlu0 %v747, 64
    %v754 = vpop.permute.xlu0 %753
    %v756 = vmul.f32 %v746, %v754
    %758 = vrot.lane.b32.xlu0 %v756, 32
    %v759 = vpop.permute.xlu0 %758
    %v761 = vadd.f32 %v751, %v759
    %v762 = vtanh.pop %v761
    %764 = vrot.lane.b32.xlu0 %v762, 64
    %v765 = vpop.permute.xlu0 %764
    %v767 = vmul.f32 %v746, %v765
    %769 = vrot.lane.b32.xlu0 %v353, 64
    %v770 = vpop.permute.xlu0 %769
    %772 = vrot.lane.b32.xlu0 %v423, 96
    %v773 = vpop.permute.xlu0 %772
    %777 = vrot.lane.b32.xlu0 %v629, 64
    %v778 = vpop.permute.xlu0 %777
    %780 = vrot.lane.b32.xlu0 %v699, 96
    %v781 = vpop.permute.xlu0 %780
    %v784 = vrot.slane %v767, 6
    %v786 = vsel %vm192, %v285, %v770
    %vm787 = vcmask 523264
    %v788 = vsel %vm787, %v786, %v773
    %vm789 = vcmask 785408
    %v790 = vsel %vm789, %v788, %v493
    %v791 = vsel %vm192, %v561, %v778
    %v792 = vsel %vm787, %v791, %v781
    %v793 = vsel %vm789, %v792, %v784
    %v794 = vpack.c.bf16 %v790, %v790
    %v795 = vpack.c.bf16 %v793, %v793
    %v797 = vperm.slane %v92, 0
    %v798 = vperm.slane %v92, 1
    %v833 = vunpack.c.l.b16 %v94
    %v834 = vunpack.c.h.b16 %v94
    %v835 = vunpack.c.l.b16 %v95
    %v836 = vunpack.c.h.b16 %v95
    %v837 = vunpack.c.l.b16 %v96
    %v838 = vunpack.c.h.b16 %v96
    %v839 = vunpack.c.l.b16 %v97
    %v840 = vunpack.c.h.b16 %v97
    %v841 = vunpack.c.l.b16 %v98
    %v842 = vunpack.c.h.b16 %v98
    %v843 = vunpack.c.l.b16 %v99
    %v844 = vunpack.c.h.b16 %v99
    %v845 = vunpack.c.l.b16 %v100
    %v846 = vunpack.c.h.b16 %v100
    %v847 = vunpack.c.l.b16 %v101
    %v848 = vunpack.c.h.b16 %v101
    %v849 = vunpack.c.l.b16 %v102
    %v850 = vunpack.c.h.b16 %v102
    %v851 = vunpack.c.l.b16 %v103
    %v852 = vunpack.c.h.b16 %v103
    %v853 = vunpack.c.l.b16 %v104
    %v854 = vunpack.c.h.b16 %v104
    %v855 = vunpack.c.l.b16 %v105
    %v856 = vunpack.c.h.b16 %v105
    %v857 = vunpack.c.l.b16 %v106
    %v858 = vunpack.c.h.b16 %v106
    %v859 = vunpack.c.l.b16 %v107
    %v860 = vunpack.c.h.b16 %v107
    %v861 = vunpack.c.l.b16 %v108
    %v862 = vunpack.c.h.b16 %v108
    %v863 = vunpack.c.l.b16 %v109
    %v864 = vunpack.c.h.b16 %v109
    %v865 = vunpack.c.l.b16 %v110
    %v866 = vunpack.c.h.b16 %v110
    %v867 = vunpack.c.l.b16 %v111
    %v868 = vunpack.c.h.b16 %v111
    %v869 = vunpack.c.l.b16 %v112
    %v870 = vunpack.c.h.b16 %v112
    %v871 = vunpack.c.l.b16 %v113
    %v872 = vunpack.c.h.b16 %v113
    %v873 = vunpack.c.l.b16 %v114
    %v874 = vunpack.c.h.b16 %v114
    %v875 = vunpack.c.l.b16 %v115
    %v876 = vunpack.c.h.b16 %v115
    %v877 = vunpack.c.l.b16 %v116
    %v878 = vunpack.c.h.b16 %v116
    %v879 = vunpack.c.l.b16 %v117
    %v880 = vunpack.c.h.b16 %v117
    %v881 = vunpack.c.l.b16 %v118
    %v882 = vunpack.c.h.b16 %v118
    %v883 = vunpack.c.l.b16 %v119
    %v884 = vunpack.c.h.b16 %v119
    %v885 = vunpack.c.l.b16 %v120
    %v886 = vunpack.c.h.b16 %v120
    %v887 = vunpack.c.l.b16 %v121
    %v888 = vunpack.c.h.b16 %v121
    %v889 = vunpack.c.l.b16 %v122
    %v890 = vunpack.c.h.b16 %v122
    %v891 = vunpack.c.l.b16 %v123
    %v892 = vunpack.c.h.b16 %v123
    %v893 = vunpack.c.l.b16 %v124
    %v894 = vunpack.c.h.b16 %v124
    %v895 = vunpack.c.l.b16 %v125
    %v896 = vunpack.c.h.b16 %v125
    %v897 = vpack.c.b16 %v835, %v833
    %v898 = vpack.c.b16 %v836, %v834
    %v899 = vpack.c.b16 %v839, %v837
    %v900 = vpack.c.b16 %v840, %v838
    %v901 = vpack.c.b16 %v843, %v841
    %v902 = vpack.c.b16 %v844, %v842
    %v903 = vpack.c.b16 %v847, %v845
    %v904 = vpack.c.b16 %v848, %v846
    %v905 = vpack.c.b16 %v851, %v849
    %v906 = vpack.c.b16 %v852, %v850
    %v907 = vpack.c.b16 %v855, %v853
    %v908 = vpack.c.b16 %v856, %v854
    %v909 = vpack.c.b16 %v859, %v857
    %v910 = vpack.c.b16 %v860, %v858
    %v911 = vpack.c.b16 %v863, %v861
    %v912 = vpack.c.b16 %v864, %v862
    %v913 = vpack.c.b16 %v867, %v865
    %v914 = vpack.c.b16 %v868, %v866
    %v915 = vpack.c.b16 %v871, %v869
    %v916 = vpack.c.b16 %v872, %v870
    %v917 = vpack.c.b16 %v875, %v873
    %v918 = vpack.c.b16 %v876, %v874
    %v919 = vpack.c.b16 %v879, %v877
    %v920 = vpack.c.b16 %v880, %v878
    %v921 = vpack.c.b16 %v883, %v881
    %v922 = vpack.c.b16 %v884, %v882
    %v923 = vpack.c.b16 %v887, %v885
    %v924 = vpack.c.b16 %v888, %v886
    %v925 = vpack.c.b16 %v891, %v889
    %v926 = vpack.c.b16 %v892, %v890
    %v927 = vpack.c.b16 %v895, %v893
    %v928 = vpack.c.b16 %v896, %v894
    %961 = vmatpush.bf16.msra.mxu0 %v911
    %962 = vmatpush.bf16.msra.mxu0 %v909
    %963 = vmatpush.bf16.msra.mxu0 %v907
    %964 = vmatpush.bf16.msra.mxu0 %v905
    %965 = vmatpush.bf16.msra.mxu0 %v903
    %966 = vmatpush.bf16.msra.mxu0 %v901
    %967 = vmatpush.bf16.msra.mxu0 %v899
    %968 = vmatpush.bf16.msra.mxu0 %v897
    %969 = vmatmul.bf16.gmra.mxu0 %v794
    %v970 = vpop.f32.mrf.mxu0
    %v971 = vadd.f32 %v797, %v970
    %v972 = vpop.f32.mrf.mxu0
    %973 = vdwg.mxu0
    %974 = vmatpush.bf16.msra.mxu0 %v927
    %975 = vmatpush.bf16.msra.mxu0 %v925
    %976 = vmatpush.bf16.msra.mxu0 %v923
    %977 = vmatpush.bf16.msra.mxu0 %v921
    %978 = vmatpush.bf16.msra.mxu0 %v919
    %979 = vmatpush.bf16.msra.mxu0 %v917
    %980 = vmatpush.bf16.msra.mxu0 %v915
    %981 = vmatpush.bf16.msra.mxu0 %v913
    %982 = vmatmul.bf16.gmra.mxu0 %v795
    %v983 = vpop.f32.mrf.mxu0
    %v984 = vadd.f32 %v971, %v983
    %v985 = vpop.f32.mrf.mxu0
    %986 = vdwg.mxu0
    %987 = vmatpush.bf16.msra.mxu0 %v912
    %988 = vmatpush.bf16.msra.mxu0 %v910
    %989 = vmatpush.bf16.msra.mxu0 %v908
    %990 = vmatpush.bf16.msra.mxu0 %v906
    %991 = vmatpush.bf16.msra.mxu0 %v904
    %992 = vmatpush.bf16.msra.mxu0 %v902
    %993 = vmatpush.bf16.msra.mxu0 %v900
    %994 = vmatpush.bf16.msra.mxu0 %v898
    %995 = vmatmul.bf16.gmra.mxu0 %v794
    %v996 = vpop.f32.mrf.mxu0
    %v997 = vadd.f32 %v798, %v996
    %v998 = vpop.f32.mrf.mxu0
    %999 = vdwg.mxu0
    %1000 = vmatpush.bf16.msra.mxu0 %v928
    %1001 = vmatpush.bf16.msra.mxu0 %v926
    %1002 = vmatpush.bf16.msra.mxu0 %v924
    %1003 = vmatpush.bf16.msra.mxu0 %v922
    %1004 = vmatpush.bf16.msra.mxu0 %v920
    %1005 = vmatpush.bf16.msra.mxu0 %v918
    %1006 = vmatpush.bf16.msra.mxu0 %v916
    %1007 = vmatpush.bf16.msra.mxu0 %v914
    %1008 = vmatmul.bf16.gmra.mxu0 %v795
    %v1009 = vpop.f32.mrf.mxu0
    %v1010 = vadd.f32 %v997, %v1009
    %v1011 = vpop.f32.mrf.mxu0
    %1012 = vdwg.mxu0
    %v1013 = vmax.f32 %v984, 0.0
    %v1014 = vmax.f32 %v1010, 0.0
    %v1015 = vpack.c.bf16 %v1013, %v1013
    %v1016 = vpack.c.bf16 %v1014, %v1014
    %v1049 = vunpack.c.l.b16 %v126
    %v1050 = vunpack.c.l.b16 %v127
    %v1051 = vunpack.c.l.b16 %v128
    %v1052 = vunpack.c.l.b16 %v129
    %v1053 = vunpack.c.l.b16 %v130
    %v1054 = vunpack.c.l.b16 %v131
    %v1055 = vunpack.c.l.b16 %v132
    %v1056 = vunpack.c.l.b16 %v133
    %v1057 = vunpack.c.l.b16 %v134
    %v1058 = vunpack.c.l.b16 %v135
    %v1059 = vunpack.c.l.b16 %v136
    %v1060 = vunpack.c.l.b16 %v137
    %v1061 = vunpack.c.l.b16 %v138
    %v1062 = vunpack.c.l.b16 %v139
    %v1063 = vunpack.c.l.b16 %v140
    %v1064 = vunpack.c.l.b16 %v141
    %v1065 = vunpack.c.l.b16 %v142
    %v1066 = vunpack.c.l.b16 %v143
    %v1067 = vunpack.c.l.b16 %v144
    %v1068 = vunpack.c.l.b16 %v145
    %v1069 = vunpack.c.l.b16 %v146
    %v1070 = vunpack.c.l.b16 %v147
    %v1071 = vunpack.c.l.b16 %v148
    %v1072 = vunpack.c.l.b16 %v149
    %v1073 = vunpack.c.l.b16 %v150
    %v1074 = vunpack.c.l.b16 %v151
    %v1075 = vunpack.c.l.b16 %v152
    %v1076 = vunpack.c.l.b16 %v153
    %v1077 = vunpack.c.l.b16 %v154
    %v1078 = vunpack.c.l.b16 %v155
    %v1079 = vunpack.c.l.b16 %v156
    %v1080 = vunpack.c.l.b16 %v157
    %v1081 = vpack.c.b16 %v1050, %v1049
    %v1082 = vpack.c.b16 %v1052, %v1051
    %v1083 = vpack.c.b16 %v1054, %v1053
    %v1084 = vpack.c.b16 %v1056, %v1055
    %v1085 = vpack.c.b16 %v1058, %v1057
    %v1086 = vpack.c.b16 %v1060, %v1059
    %v1087 = vpack.c.b16 %v1062, %v1061
    %v1088 = vpack.c.b16 %v1064, %v1063
    %v1089 = vpack.c.b16 %v1066, %v1065
    %v1090 = vpack.c.b16 %v1068, %v1067
    %v1091 = vpack.c.b16 %v1070, %v1069
    %v1092 = vpack.c.b16 %v1072, %v1071
    %v1093 = vpack.c.b16 %v1074, %v1073
    %v1094 = vpack.c.b16 %v1076, %v1075
    %v1095 = vpack.c.b16 %v1078, %v1077
    %v1096 = vpack.c.b16 %v1080, %v1079
    %1113 = vmatpush.bf16.msra.mxu0 %v1088
    %1114 = vmatpush.bf16.msra.mxu0 %v1087
    %1115 = vmatpush.bf16.msra.mxu0 %v1086
    %1116 = vmatpush.bf16.msra.mxu0 %v1085
    %1117 = vmatpush.bf16.msra.mxu0 %v1084
    %1118 = vmatpush.bf16.msra.mxu0 %v1083
    %1119 = vmatpush.bf16.msra.mxu0 %v1082
    %1120 = vmatpush.bf16.msra.mxu0 %v1081
    %1121 = vmatmul.bf16.gmra.mxu0 %v1015
    %v1122 = vpop.f32.mrf.mxu0
    %v1123 = vadd.f32 %v93, %v1122
    %v1124 = vpop.f32.mrf.mxu0
    %1125 = vdwg.mxu0
    %1126 = vmatpush.bf16.msra.mxu0 %v1096
    %1127 = vmatpush.bf16.msra.mxu0 %v1095
    %1128 = vmatpush.bf16.msra.mxu0 %v1094
    %1129 = vmatpush.bf16.msra.mxu0 %v1093
    %1130 = vmatpush.bf16.msra.mxu0 %v1092
    %1131 = vmatpush.bf16.msra.mxu0 %v1091
    %1132 = vmatpush.bf16.msra.mxu0 %v1090
    %1133 = vmatpush.bf16.msra.mxu0 %v1089
    %1134 = vmatmul.bf16.gmra.mxu0 %v1016
    %v1135 = vpop.f32.mrf.mxu0
    %v1136 = vadd.f32 %v1123, %v1135
    %v1137 = vpop.f32.mrf.mxu0
    %1138 = vdwg.mxu0
    %v1139 = vtanh.pop %v1136
    %1140 = vst [vmem:[#allocation10] sm:$0x3] %v1139
    // Predicated region
    $region34: #{tpu_custom_call.1} parent=1 // pred_check
      _
    $region35: #{tpu_custom_call.1} parent=1 // pred_check_branch
      %1142 = sbr.rel (0) target = $region37
    $region36: #{tpu_custom_call.1} parent=1 // pred_region
      %1144 = vsyncadd [#allocation4], 0
      %s1146 = sshll.u32 [#allocation10], 4
      %s1147 = int_to_ptr.vmem [resolvable:$true] %s1146
      %s1148 = sshll.u32 %s4, 4
      %s1149 = int_to_ptr.hbm [resolvable:$true] %s1148
      %1151 = dma.vmem_to_hbm [thread:$0]  %s1147, 32, %s1149, [#allocation4]
    $region37: #{tpu_custom_call.1} parent=1 // pred_fallthru
      _
    // Predicated region
    $region38: #{tpu_custom_call.1} parent=1 // pred_check
      _
    $region39: #{tpu_custom_call.1} parent=1 // pred_check_branch
      %1153 = sbr.rel (0) target = $region41
    $region40: #{tpu_custom_call.1} parent=1 // pred_region
      %1155 = dma.done [#allocation4], 32
    $region41: #{tpu_custom_call.1} parent=1 // pred_fallthru
      _
    %1156 = vsyncpa [#allocation3], 1
    %1157 = vsyncpa [#allocation6], 1
    %1158 = vsyncpa [#allocation9], 1
    %1159 = vsyncpa [#allocation4], 1

</llo_original>
